<compile_context>
chip_gen: v6e
topology: v6e:2x2x1
jax: 0.10.0
libtpu: 0.0.40
codegen_flags: <defaults>
</compile_context>

<pallas_src>
import functools

import jax
import jax.numpy as jnp
from jax.experimental import pallas as pl
from jax.experimental.pallas import tpu as pltpu


def _round_up(x, m):
    return (x + m - 1) // m * m


def _chip_defaults():
    """(row_tile, vmem_limit_bytes) per TPU generation; conservative fallback."""
    try:
        vmem_cap = pltpu.get_tpu_info().vmem_capacity_bytes
    except Exception:
        vmem_cap = None
    if vmem_cap is not None and vmem_cap > 80 * 1024 * 1024:
        return 2048, 64 * 1024 * 1024      # v5e / v6e: 128 MiB VMEM
    return 1024, 40 * 1024 * 1024          # v7x (64 MiB VMEM) or unknown


def _pick_tm(n_rows, tm_max):
    """Row tile: multiple of 16 (bf16 sublanes); >=2 grid steps when possible."""
    tm = min(tm_max, _round_up(n_rows, 16))
    if n_rows <= tm and n_rows >= 32:      # single step but splittable -> 2 steps
        tm = _round_up((n_rows + 1) // 2, 16)
    return max(tm, 16)


# ----------------------------------------------------------------------------
# Fused kernel: 4x (x @ W0 + b0 -> ReLU -> ... -> x @ WL + bL), then the
# area-weighted ensemble sum.  x / W are bf16 (MXU native), accumulation, bias
# add, ReLU and the final weighting are f32; output stored as bf16.
# ----------------------------------------------------------------------------
def _ensemble_mlp_kernel(*refs):
    """refs = (x0, x1, x2, x3, wn, w0, b0, ..., wL, bL, out)."""
    x_refs = refs[0:4]
    wn_ref = refs[4]
    out_ref = refs[-1]
    param_refs = refs[5:-1]                 # w0, b0, w1, b1, ..., wL, bL
    n_layers = len(param_refs) // 2

    wn = wn_ref[...]                        # f32 (tm, 4) normalized ensemble weights
    acc = None
    for s in range(4):
        h = x_refs[s][...]                  # bf16 (tm, in_dim)
        for i in range(n_layers):
            w = param_refs[2 * i][...]      # bf16 (d_in, d_out_pad)
            b = param_refs[2 * i + 1][...]  # f32  (1, d_out_pad)
            z = jnp.dot(h, w, preferred_element_type=jnp.float32) + b
            if i < n_layers - 1:
                h = jnp.maximum(z, 0.0).astype(jnp.bfloat16)
            else:
                h = z                       # final layer stays f32
        term = h * wn[:, s:s + 1]
        acc = term if acc is None else acc + term
    out_ref[...] = acc.astype(out_ref.dtype)


def pallas_ensemble_mlp(padded_params, xs, wn, *, tm, vmem_limit_bytes):
    """xs: 4 arrays (N, in_dim) bf16; wn: (N, 4) f32 -> (N, out_pad) bf16."""
    n, in_dim = xs[0].shape
    out_pad = padded_params[-1][0].shape[1]

    tm_eff = _pick_tm(n, tm)
    n_pad = _round_up(n, tm_eff)
    if n_pad != n:
        pad = n_pad - n
        xs = [jnp.concatenate([x, jnp.zeros((pad, in_dim), x.dtype)], axis=0)
              for x in xs]
        wn = jnp.concatenate([wn, jnp.zeros((pad, 4), wn.dtype)], axis=0)

    flat_params = []
    for w, b in padded_params:
        flat_params.append(w)
        flat_params.append(b)

    in_specs = [pl.BlockSpec((tm_eff, in_dim), lambda i: (i, 0))
                for _ in range(4)]
    in_specs.append(pl.BlockSpec((tm_eff, 4), lambda i: (i, 0)))
    for p in flat_params:
        # Grid-invariant weights/biases: constant index_map -> fetched once.
        # TODO(synk): pipeline_mode=pl.Buffered(1) would drop their double
        # buffers (matters for real LIIF weights under v7x's 64 MiB VMEM).
        in_specs.append(pl.BlockSpec(p.shape, lambda i: (0, 0)))

    out = pl.pallas_call(
        _ensemble_mlp_kernel,
        out_shape=jax.ShapeDtypeStruct((n_pad, out_pad), jnp.bfloat16),
        grid_spec=pltpu.PrefetchScalarGridSpec(
            num_scalar_prefetch=0,
            grid=(n_pad // tm_eff,),
            in_specs=in_specs,
            out_specs=pl.BlockSpec((tm_eff, out_pad), lambda i: (i, 0)),
        ),
        compiler_params=pltpu.CompilerParams(
            dimension_semantics=("parallel",),
            vmem_limit_bytes=vmem_limit_bytes,
        ),
    )(*xs, wn, *flat_params)
    return out[:n]


# ----------------------------------------------------------------------------
# Parameter padding: hidden/out dims padded to `lane` (weights bf16, bias f32).
# Layer 0 keeps its true in_dim on the contraction axis (input is lane-unpadded
# in HBM; the compiler pads K in VMEM).  Zero rows/cols keep the math identical.
# For real LIIF hidden sizes (>=256) use lane=256 on v6e/v7x's 256-wide MXU.
# ----------------------------------------------------------------------------
def pad_mlp_params(params, lane=128):
    padded = []
    for li, (w, b) in enumerate(params):
        d_in, d_out = w.shape
        d_in_p = d_in if li == 0 else _round_up(d_in, lane)
        d_out_p = _round_up(d_out, lane)
        w_p = jnp.zeros((d_in_p, d_out_p), jnp.bfloat16)
        w_p = w_p.at[:d_in, :d_out].set(w.astype(jnp.bfloat16))
        b_p = jnp.zeros((1, d_out_p), jnp.float32)
        b_p = b_p.at[:, :d_out].set(b.reshape(1, -1).astype(jnp.float32))
        padded.append((w_p, b_p))
    return padded


# ----------------------------------------------------------------------------
# Glue: nearest grid_sample (align_corners=False) as index math + gather.
# ----------------------------------------------------------------------------
def _nearest_indices(coords_hw, H, W):
    """coords_hw: (B, Q, 2) = (h, w) in [-1, 1] -> int32 (iy, ix).

    Matches grid_sample(mode='nearest', align_corners=False); jnp.round is
    half-to-even, torch rounds half away from zero — ties are measure-zero
    after the eps clamp on the shifted grid.
    """
    iy = jnp.round(((coords_hw[..., 0] + 1.0) * H - 1.0) * 0.5).astype(jnp.int32)
    ix = jnp.round(((coords_hw[..., 1] + 1.0) * W - 1.0) * 0.5).astype(jnp.int32)
    return jnp.clip(iy, 0, H - 1), jnp.clip(ix, 0, W - 1)


def _gather_nchw(img, iy, ix):
    """img: (B, C, H, W); iy/ix: (B, Q) -> (B, Q, C)."""
    B, C, H, W = img.shape
    idx = iy * W + ix                                    # (B, Q)
    flat = img.reshape(B, C, H * W)
    idx_b = jnp.broadcast_to(idx[:, None, :], (B, C, idx.shape[1]))
    gathered = jnp.take_along_axis(flat, idx_b, axis=2)  # (B, C, Q)
    return jnp.transpose(gathered, (0, 2, 1))            # (B, Q, C)


def _texel_center_coords(iy, ix, H, W):
    """Texel-center coordinates; identical formula to make_coord."""
    rh = 1.0 / H
    rw = 1.0 / W
    ch = -1.0 + rh + 2.0 * rh * iy.astype(jnp.float32)
    cw = -1.0 + rw + 2.0 * rw * ix.astype(jnp.float32)
    return jnp.stack([ch, cw], axis=-1)                  # (B, Q, 2)


def make_coord(shape):
    """Coordinates at grid centers, matching the PyTorch helper (reference)."""
    seqs = []
    for n in shape:
        r = 1.0 / n
        seqs.append(-1.0 + r + 2.0 * r * jnp.arange(n, dtype=jnp.float32))
    mesh = jnp.meshgrid(*seqs, indexing="ij")
    return jnp.stack(mesh, axis=-1)


def _gather_shift_inputs(feat, s_grid, s_cell):
    """Nearest-gather glue: 4 shifted bf16 MLP inputs + f32 areas.

    TODO(synk): fuse this gather into the kernel via scalar-prefetched indices
    + manual DMA to kill the (N, in_dim) HBM round trips entirely.
    """
    B, C, H, W = feat.shape
    batch, Q = s_grid.shape[0], s_grid.shape[1]
    eps_shift = 1e-6
    delta_h = 1.0 / H
    delta_w = 1.0 / W
    hw_scale = jnp.array([H, W], dtype=jnp.float32)
    q_cell = (s_cell * hw_scale).astype(jnp.bfloat16)    # (B, Q, 2)

    xs, areas = [], []
    for r in (-1, 1):
        for c in (-1, 1):
            shift = jnp.array([r * delta_h, c * delta_w], jnp.float32)
            fine_grid = jnp.clip(s_grid + shift, -1.0 + eps_shift, 1.0 - eps_shift)
            iy, ix = _nearest_indices(fine_grid, H, W)
            q_feat = _gather_nchw(feat, iy, ix)          # (B, Q, C) f32
            q_coord = _texel_center_coords(iy, ix, H, W) # (B, Q, 2) f32
            q_grid = (s_grid - q_coord) * hw_scale       # (B, Q, 2) f32
            areas.append(jnp.abs(q_grid[..., 0] * q_grid[..., 1]) + 1e-9)
            x_s = jnp.concatenate(
                [q_feat.astype(jnp.bfloat16),
                 q_grid.astype(jnp.bfloat16),
                 q_cell], axis=-1).reshape(batch * Q, C + 4)
            xs.append(x_s)
    return xs, areas


# ----------------------------------------------------------------------------
# Full forward: gather glue outside, MLP + 4-shift ensemble reduction fused in
# a single Pallas call emitting one (B*Q, out_pad) bf16 result.
# ----------------------------------------------------------------------------
@functools.partial(jax.jit, static_argnames=("out_dim", "tm", "vmem_limit_bytes"))
def mlp_module_forward(padded_params, feat, s_grid, s_cell, *, out_dim,
                       tm=None, vmem_limit_bytes=None):
    if tm is None or vmem_limit_bytes is None:
        d_tm, d_vmem = _chip_defaults()
        tm = tm if tm is not None else d_tm
        vmem_limit_bytes = (vmem_limit_bytes if vmem_limit_bytes is not None
                            else d_vmem)

    batch, Q = s_grid.shape[0], s_grid.shape[1]
    xs, areas = _gather_shift_inputs(feat, s_grid, s_cell)

    # LIIF diagonal-swap ensemble weights, normalized outside the kernel.
    total_area = areas[0] + areas[1] + areas[2] + areas[3]
    wn = jnp.stack([areas[3], areas[2], areas[1], areas[0]],
                   axis=-1) / total_area[..., None]          # (B, Q, 4) f32
    wn = wn.reshape(batch * Q, 4).astype(jnp.float32)

    out = pallas_ensemble_mlp(padded_params, xs, wn,
                              tm=tm, vmem_limit_bytes=vmem_limit_bytes)
    return out[:, :out_dim].astype(jnp.float32).reshape(batch, Q, out_dim)


# ----------------------------------------------------------------------------
# Deterministic parameter init (PyTorch nn.Linear-style uniform, seeded)
# ----------------------------------------------------------------------------
def init_mlp_params(key, in_dim, out_dim, hidden_list):
    dims = [in_dim] + list(hidden_list) + [out_dim]
    params = []
    for i in range(len(dims) - 1):
        d_in, d_out = dims[i], dims[i + 1]
        key, kw, kb = jax.random.split(key, 3)
        bound = 1.0 / (d_in ** 0.5)
        w = jax.random.uniform(kw, (d_in, d_out), jnp.float32, -bound, bound)
        b = jax.random.uniform(kb, (1, d_out), jnp.float32, -bound, bound)
        params.append((w, b))
    return params


def _mlp_ref_bf16(params, x_bf16):
    """Pure-JAX MLP using the same bf16-input / f32-accumulate recipe."""
    h = x_bf16
    for i, (w, b) in enumerate(params):
        h = jnp.dot(h, w.astype(jnp.bfloat16),
                    preferred_element_type=jnp.float32) + b.reshape(1, -1)
        if i < len(params) - 1:
            h = jnp.maximum(h, 0.0).astype(jnp.bfloat16)
    return h


def forward_ref(params, feat, s_grid, s_cell, out_dim):
    """Pure-JAX reference of the full forward (same gather + bf16 MLP recipe)."""
    batch, Q = s_grid.shape[0], s_grid.shape[1]
    xs, areas = _gather_shift_inputs(feat, s_grid, s_cell)
    total_area = areas[0] + areas[1] + areas[2] + areas[3]
    weights = [areas[3], areas[2], areas[1], areas[0]]
    ret = jnp.zeros((batch, Q, out_dim), jnp.float32)
    for s in range(4):
        pred = _mlp_ref_bf16(params, xs[s]).reshape(batch, Q, out_dim)
        ret = ret + pred * (weights[s] / total_area)[..., None]
    return ret


if __name__ == "__main__":
    key = jax.random.PRNGKey(0)

    B, C, H, W = 2, 4, 16, 16
    hidden_list = [32, 32]
    out_dim = 3
    in_dim = C + 2 + 2            # q_feat (C) + q_grid (2) + q_cell (2)

    k1, k2, k3, k4 = jax.random.split(key, 4)
    feat = jax.random.normal(k1, (B, C, H, W), jnp.float32)
    params = init_mlp_params(k4, in_dim, out_dim, hidden_list)
    padded_params = pad_mlp_params(params)

    # Q=8: tiny 1-step grid; Q=100: padded 2-step grid (exercises row padding).
    for Q in (8, 100):
        kq = jax.random.fold_in(k2, Q)
        s_grid = jax.random.uniform(kq, (B, Q, 2), jnp.float32, -1.0, 1.0)
        s_cell = jnp.broadcast_to(
            jnp.array([2.0 / H, 2.0 / W], jnp.float32), (B, Q, 2))

        out = mlp_module_forward(padded_params, feat, s_grid, s_cell,
                                 out_dim=out_dim)
        out = jax.block_until_ready(out)
        assert out.shape == (B, Q, out_dim)
        assert bool(jnp.all(jnp.isfinite(out)))

        want = forward_ref(params, feat, s_grid, s_cell, out_dim)
        assert jnp.allclose(out, want, atol=2e-2, rtol=2e-2), (
            float(jnp.max(jnp.abs(out - want))))

    print("KERNEL_OK")
</pallas_src>

<mosaic_0001>
module attributes {stable_mosaic.version = 11 : i64} {
  func.func @_ensemble_mlp_kernel(%arg0: i32, %arg1: memref<16x8xbf16, #tpu.memory_space<vmem>>, %arg2: memref<16x8xbf16, #tpu.memory_space<vmem>>, %arg3: memref<16x8xbf16, #tpu.memory_space<vmem>>, %arg4: memref<16x8xbf16, #tpu.memory_space<vmem>>, %arg5: memref<16x4xf32, #tpu.memory_space<vmem>>, %arg6: memref<8x128xbf16, #tpu.memory_space<vmem>>, %arg7: memref<1x128xf32, #tpu.memory_space<vmem>>, %arg8: memref<128x128xbf16, #tpu.memory_space<vmem>>, %arg9: memref<1x128xf32, #tpu.memory_space<vmem>>, %arg10: memref<128x128xbf16, #tpu.memory_space<vmem>>, %arg11: memref<1x128xf32, #tpu.memory_space<vmem>>, %arg12: memref<16x128xbf16, #tpu.memory_space<vmem>>) attributes {dimension_semantics = [#tpu.dimension_semantics<parallel>], iteration_bounds = array<i64: 1>, scalar_prefetch = 0 : i64, scratch_operands = 0 : i64, tpu.core_type = #tpu.core_type<tc>, window_params = [{transform_indices = @transform_0, window_bounds = array<i64: 16, 8>}, {transform_indices = @transform_1, window_bounds = array<i64: 16, 8>}, {transform_indices = @transform_2, window_bounds = array<i64: 16, 8>}, {transform_indices = @transform_3, window_bounds = array<i64: 16, 8>}, {transform_indices = @transform_4, window_bounds = array<i64: 16, 4>}, {pipeline_mode = #tpu.pipeline_mode<synchronous>, transform_indices = @transform_5, window_bounds = array<i64: 8, 128>}, {pipeline_mode = #tpu.pipeline_mode<synchronous>, transform_indices = @transform_6, window_bounds = array<i64: 1, 128>}, {pipeline_mode = #tpu.pipeline_mode<synchronous>, transform_indices = @transform_7, window_bounds = array<i64: 128, 128>}, {pipeline_mode = #tpu.pipeline_mode<synchronous>, transform_indices = @transform_8, window_bounds = array<i64: 1, 128>}, {pipeline_mode = #tpu.pipeline_mode<synchronous>, transform_indices = @transform_9, window_bounds = array<i64: 128, 128>}, {pipeline_mode = #tpu.pipeline_mode<synchronous>, transform_indices = @transform_10, window_bounds = array<i64: 1, 128>}, {transform_indices = @transform_11, window_bounds = array<i64: 16, 128>}]} {
    %c0 = arith.constant 0 : index
    %c0_0 = arith.constant 0 : index
    %0 = vector.load %arg5[%c0, %c0_0] : memref<16x4xf32, #tpu.memory_space<vmem>>, vector<16x4xf32>
    %c0_1 = arith.constant 0 : index
    %c0_2 = arith.constant 0 : index
    %1 = vector.load %arg1[%c0_1, %c0_2] : memref<16x8xbf16, #tpu.memory_space<vmem>>, vector<16x8xbf16>
    %c0_3 = arith.constant 0 : index
    %c0_4 = arith.constant 0 : index
    %2 = vector.load %arg6[%c0_3, %c0_4] : memref<8x128xbf16, #tpu.memory_space<vmem>>, vector<8x128xbf16>
    %c0_5 = arith.constant 0 : index
    %c0_6 = arith.constant 0 : index
    %3 = vector.load %arg7[%c0_5, %c0_6] : memref<1x128xf32, #tpu.memory_space<vmem>>, vector<1x128xf32>
    %cst = arith.constant dense<0.000000e+00> : vector<16x128xf32>
    %4 = tpu.matmul %1, %2, %cst {dimension_numbers = #tpu.dot_dimension_numbers<[1], [0], [0], [1], [0, 0, 1, 1], [], []>} : vector<16x8xbf16>, vector<8x128xbf16>, vector<16x128xf32> -> vector<16x128xf32>
    %5 = vector.broadcast %3 : vector<1x128xf32> to vector<16x128xf32>
    %6 = arith.addf %4, %5 : vector<16x128xf32>
    %cst_7 = arith.constant 0.000000e+00 : f32
    %7 = vector.broadcast %cst_7 : f32 to vector<16x128xf32>
    %8 = arith.maximumf %6, %7 : vector<16x128xf32>
    %9 = arith.truncf %8 : vector<16x128xf32> to vector<16x128xbf16>
    %c0_8 = arith.constant 0 : index
    %c0_9 = arith.constant 0 : index
    %10 = vector.load %arg8[%c0_8, %c0_9] : memref<128x128xbf16, #tpu.memory_space<vmem>>, vector<128x128xbf16>
    %c0_10 = arith.constant 0 : index
    %c0_11 = arith.constant 0 : index
    %11 = vector.load %arg9[%c0_10, %c0_11] : memref<1x128xf32, #tpu.memory_space<vmem>>, vector<1x128xf32>
    %cst_12 = arith.constant dense<0.000000e+00> : vector<16x128xf32>
    %12 = tpu.matmul %9, %10, %cst_12 {dimension_numbers = #tpu.dot_dimension_numbers<[1], [0], [0], [1], [0, 0, 1, 1], [], []>} : vector<16x128xbf16>, vector<128x128xbf16>, vector<16x128xf32> -> vector<16x128xf32>
    %13 = vector.broadcast %11 : vector<1x128xf32> to vector<16x128xf32>
    %14 = arith.addf %12, %13 : vector<16x128xf32>
    %cst_13 = arith.constant 0.000000e+00 : f32
    %15 = vector.broadcast %cst_13 : f32 to vector<16x128xf32>
    %16 = arith.maximumf %14, %15 : vector<16x128xf32>
    %17 = arith.truncf %16 : vector<16x128xf32> to vector<16x128xbf16>
    %c0_14 = arith.constant 0 : index
    %c0_15 = arith.constant 0 : index
    %18 = vector.load %arg10[%c0_14, %c0_15] : memref<128x128xbf16, #tpu.memory_space<vmem>>, vector<128x128xbf16>
    %c0_16 = arith.constant 0 : index
    %c0_17 = arith.constant 0 : index
    %19 = vector.load %arg11[%c0_16, %c0_17] : memref<1x128xf32, #tpu.memory_space<vmem>>, vector<1x128xf32>
    %cst_18 = arith.constant dense<0.000000e+00> : vector<16x128xf32>
    %20 = tpu.matmul %17, %18, %cst_18 {dimension_numbers = #tpu.dot_dimension_numbers<[1], [0], [0], [1], [0, 0, 1, 1], [], []>} : vector<16x128xbf16>, vector<128x128xbf16>, vector<16x128xf32> -> vector<16x128xf32>
    %21 = vector.broadcast %19 : vector<1x128xf32> to vector<16x128xf32>
    %22 = arith.addf %20, %21 : vector<16x128xf32>
    %23 = vector.extract_strided_slice %0 {offsets = [0, 0], sizes = [16, 1], strides = [1, 1]} : vector<16x4xf32> to vector<16x1xf32>
    %24 = vector.broadcast %23 : vector<16x1xf32> to vector<16x128xf32>
    %25 = arith.mulf %22, %24 : vector<16x128xf32>
    %c0_19 = arith.constant 0 : index
    %c0_20 = arith.constant 0 : index
    %26 = vector.load %arg2[%c0_19, %c0_20] : memref<16x8xbf16, #tpu.memory_space<vmem>>, vector<16x8xbf16>
    %c0_21 = arith.constant 0 : index
    %c0_22 = arith.constant 0 : index
    %27 = vector.load %arg6[%c0_21, %c0_22] : memref<8x128xbf16, #tpu.memory_space<vmem>>, vector<8x128xbf16>
    %c0_23 = arith.constant 0 : index
    %c0_24 = arith.constant 0 : index
    %28 = vector.load %arg7[%c0_23, %c0_24] : memref<1x128xf32, #tpu.memory_space<vmem>>, vector<1x128xf32>
    %cst_25 = arith.constant dense<0.000000e+00> : vector<16x128xf32>
    %29 = tpu.matmul %26, %27, %cst_25 {dimension_numbers = #tpu.dot_dimension_numbers<[1], [0], [0], [1], [0, 0, 1, 1], [], []>} : vector<16x8xbf16>, vector<8x128xbf16>, vector<16x128xf32> -> vector<16x128xf32>
    %30 = vector.broadcast %28 : vector<1x128xf32> to vector<16x128xf32>
    %31 = arith.addf %29, %30 : vector<16x128xf32>
    %cst_26 = arith.constant 0.000000e+00 : f32
    %32 = vector.broadcast %cst_26 : f32 to vector<16x128xf32>
    %33 = arith.maximumf %31, %32 : vector<16x128xf32>
    %34 = arith.truncf %33 : vector<16x128xf32> to vector<16x128xbf16>
    %c0_27 = arith.constant 0 : index
    %c0_28 = arith.constant 0 : index
    %35 = vector.load %arg8[%c0_27, %c0_28] : memref<128x128xbf16, #tpu.memory_space<vmem>>, vector<128x128xbf16>
    %c0_29 = arith.constant 0 : index
    %c0_30 = arith.constant 0 : index
    %36 = vector.load %arg9[%c0_29, %c0_30] : memref<1x128xf32, #tpu.memory_space<vmem>>, vector<1x128xf32>
    %cst_31 = arith.constant dense<0.000000e+00> : vector<16x128xf32>
    %37 = tpu.matmul %34, %35, %cst_31 {dimension_numbers = #tpu.dot_dimension_numbers<[1], [0], [0], [1], [0, 0, 1, 1], [], []>} : vector<16x128xbf16>, vector<128x128xbf16>, vector<16x128xf32> -> vector<16x128xf32>
    %38 = vector.broadcast %36 : vector<1x128xf32> to vector<16x128xf32>
    %39 = arith.addf %37, %38 : vector<16x128xf32>
    %cst_32 = arith.constant 0.000000e+00 : f32
    %40 = vector.broadcast %cst_32 : f32 to vector<16x128xf32>
    %41 = arith.maximumf %39, %40 : vector<16x128xf32>
    %42 = arith.truncf %41 : vector<16x128xf32> to vector<16x128xbf16>
    %c0_33 = arith.constant 0 : index
    %c0_34 = arith.constant 0 : index
    %43 = vector.load %arg10[%c0_33, %c0_34] : memref<128x128xbf16, #tpu.memory_space<vmem>>, vector<128x128xbf16>
    %c0_35 = arith.constant 0 : index
    %c0_36 = arith.constant 0 : index
    %44 = vector.load %arg11[%c0_35, %c0_36] : memref<1x128xf32, #tpu.memory_space<vmem>>, vector<1x128xf32>
    %cst_37 = arith.constant dense<0.000000e+00> : vector<16x128xf32>
    %45 = tpu.matmul %42, %43, %cst_37 {dimension_numbers = #tpu.dot_dimension_numbers<[1], [0], [0], [1], [0, 0, 1, 1], [], []>} : vector<16x128xbf16>, vector<128x128xbf16>, vector<16x128xf32> -> vector<16x128xf32>
    %46 = vector.broadcast %44 : vector<1x128xf32> to vector<16x128xf32>
    %47 = arith.addf %45, %46 : vector<16x128xf32>
    %48 = vector.extract_strided_slice %0 {offsets = [0, 1], sizes = [16, 1], strides = [1, 1]} : vector<16x4xf32> to vector<16x1xf32>
    %49 = vector.broadcast %48 : vector<16x1xf32> to vector<16x128xf32>
    %50 = arith.mulf %47, %49 : vector<16x128xf32>
    %51 = arith.addf %25, %50 : vector<16x128xf32>
    %c0_38 = arith.constant 0 : index
    %c0_39 = arith.constant 0 : index
    %52 = vector.load %arg3[%c0_38, %c0_39] : memref<16x8xbf16, #tpu.memory_space<vmem>>, vector<16x8xbf16>
    %c0_40 = arith.constant 0 : index
    %c0_41 = arith.constant 0 : index
    %53 = vector.load %arg6[%c0_40, %c0_41] : memref<8x128xbf16, #tpu.memory_space<vmem>>, vector<8x128xbf16>
    %c0_42 = arith.constant 0 : index
    %c0_43 = arith.constant 0 : index
    %54 = vector.load %arg7[%c0_42, %c0_43] : memref<1x128xf32, #tpu.memory_space<vmem>>, vector<1x128xf32>
    %cst_44 = arith.constant dense<0.000000e+00> : vector<16x128xf32>
    %55 = tpu.matmul %52, %53, %cst_44 {dimension_numbers = #tpu.dot_dimension_numbers<[1], [0], [0], [1], [0, 0, 1, 1], [], []>} : vector<16x8xbf16>, vector<8x128xbf16>, vector<16x128xf32> -> vector<16x128xf32>
    %56 = vector.broadcast %54 : vector<1x128xf32> to vector<16x128xf32>
    %57 = arith.addf %55, %56 : vector<16x128xf32>
    %cst_45 = arith.constant 0.000000e+00 : f32
    %58 = vector.broadcast %cst_45 : f32 to vector<16x128xf32>
    %59 = arith.maximumf %57, %58 : vector<16x128xf32>
    %60 = arith.truncf %59 : vector<16x128xf32> to vector<16x128xbf16>
    %c0_46 = arith.constant 0 : index
    %c0_47 = arith.constant 0 : index
    %61 = vector.load %arg8[%c0_46, %c0_47] : memref<128x128xbf16, #tpu.memory_space<vmem>>, vector<128x128xbf16>
    %c0_48 = arith.constant 0 : index
    %c0_49 = arith.constant 0 : index
    %62 = vector.load %arg9[%c0_48, %c0_49] : memref<1x128xf32, #tpu.memory_space<vmem>>, vector<1x128xf32>
    %cst_50 = arith.constant dense<0.000000e+00> : vector<16x128xf32>
    %63 = tpu.matmul %60, %61, %cst_50 {dimension_numbers = #tpu.dot_dimension_numbers<[1], [0], [0], [1], [0, 0, 1, 1], [], []>} : vector<16x128xbf16>, vector<128x128xbf16>, vector<16x128xf32> -> vector<16x128xf32>
    %64 = vector.broadcast %62 : vector<1x128xf32> to vector<16x128xf32>
    %65 = arith.addf %63, %64 : vector<16x128xf32>
    %cst_51 = arith.constant 0.000000e+00 : f32
    %66 = vector.broadcast %cst_51 : f32 to vector<16x128xf32>
    %67 = arith.maximumf %65, %66 : vector<16x128xf32>
    %68 = arith.truncf %67 : vector<16x128xf32> to vector<16x128xbf16>
    %c0_52 = arith.constant 0 : index
    %c0_53 = arith.constant 0 : index
    %69 = vector.load %arg10[%c0_52, %c0_53] : memref<128x128xbf16, #tpu.memory_space<vmem>>, vector<128x128xbf16>
    %c0_54 = arith.constant 0 : index
    %c0_55 = arith.constant 0 : index
    %70 = vector.load %arg11[%c0_54, %c0_55] : memref<1x128xf32, #tpu.memory_space<vmem>>, vector<1x128xf32>
    %cst_56 = arith.constant dense<0.000000e+00> : vector<16x128xf32>
    %71 = tpu.matmul %68, %69, %cst_56 {dimension_numbers = #tpu.dot_dimension_numbers<[1], [0], [0], [1], [0, 0, 1, 1], [], []>} : vector<16x128xbf16>, vector<128x128xbf16>, vector<16x128xf32> -> vector<16x128xf32>
    %72 = vector.broadcast %70 : vector<1x128xf32> to vector<16x128xf32>
    %73 = arith.addf %71, %72 : vector<16x128xf32>
    %74 = vector.extract_strided_slice %0 {offsets = [0, 2], sizes = [16, 1], strides = [1, 1]} : vector<16x4xf32> to vector<16x1xf32>
    %75 = vector.broadcast %74 : vector<16x1xf32> to vector<16x128xf32>
    %76 = arith.mulf %73, %75 : vector<16x128xf32>
    %77 = arith.addf %51, %76 : vector<16x128xf32>
    %c0_57 = arith.constant 0 : index
    %c0_58 = arith.constant 0 : index
    %78 = vector.load %arg4[%c0_57, %c0_58] : memref<16x8xbf16, #tpu.memory_space<vmem>>, vector<16x8xbf16>
    %c0_59 = arith.constant 0 : index
    %c0_60 = arith.constant 0 : index
    %79 = vector.load %arg6[%c0_59, %c0_60] : memref<8x128xbf16, #tpu.memory_space<vmem>>, vector<8x128xbf16>
    %c0_61 = arith.constant 0 : index
    %c0_62 = arith.constant 0 : index
    %80 = vector.load %arg7[%c0_61, %c0_62] : memref<1x128xf32, #tpu.memory_space<vmem>>, vector<1x128xf32>
    %cst_63 = arith.constant dense<0.000000e+00> : vector<16x128xf32>
    %81 = tpu.matmul %78, %79, %cst_63 {dimension_numbers = #tpu.dot_dimension_numbers<[1], [0], [0], [1], [0, 0, 1, 1], [], []>} : vector<16x8xbf16>, vector<8x128xbf16>, vector<16x128xf32> -> vector<16x128xf32>
    %82 = vector.broadcast %80 : vector<1x128xf32> to vector<16x128xf32>
    %83 = arith.addf %81, %82 : vector<16x128xf32>
    %cst_64 = arith.constant 0.000000e+00 : f32
    %84 = vector.broadcast %cst_64 : f32 to vector<16x128xf32>
    %85 = arith.maximumf %83, %84 : vector<16x128xf32>
    %86 = arith.truncf %85 : vector<16x128xf32> to vector<16x128xbf16>
    %c0_65 = arith.constant 0 : index
    %c0_66 = arith.constant 0 : index
    %87 = vector.load %arg8[%c0_65, %c0_66] : memref<128x128xbf16, #tpu.memory_space<vmem>>, vector<128x128xbf16>
    %c0_67 = arith.constant 0 : index
    %c0_68 = arith.constant 0 : index
    %88 = vector.load %arg9[%c0_67, %c0_68] : memref<1x128xf32, #tpu.memory_space<vmem>>, vector<1x128xf32>
    %cst_69 = arith.constant dense<0.000000e+00> : vector<16x128xf32>
    %89 = tpu.matmul %86, %87, %cst_69 {dimension_numbers = #tpu.dot_dimension_numbers<[1], [0], [0], [1], [0, 0, 1, 1], [], []>} : vector<16x128xbf16>, vector<128x128xbf16>, vector<16x128xf32> -> vector<16x128xf32>
    %90 = vector.broadcast %88 : vector<1x128xf32> to vector<16x128xf32>
    %91 = arith.addf %89, %90 : vector<16x128xf32>
    %cst_70 = arith.constant 0.000000e+00 : f32
    %92 = vector.broadcast %cst_70 : f32 to vector<16x128xf32>
    %93 = arith.maximumf %91, %92 : vector<16x128xf32>
    %94 = arith.truncf %93 : vector<16x128xf32> to vector<16x128xbf16>
    %c0_71 = arith.constant 0 : index
    %c0_72 = arith.constant 0 : index
    %95 = vector.load %arg10[%c0_71, %c0_72] : memref<128x128xbf16, #tpu.memory_space<vmem>>, vector<128x128xbf16>
    %c0_73 = arith.constant 0 : index
    %c0_74 = arith.constant 0 : index
    %96 = vector.load %arg11[%c0_73, %c0_74] : memref<1x128xf32, #tpu.memory_space<vmem>>, vector<1x128xf32>
    %cst_75 = arith.constant dense<0.000000e+00> : vector<16x128xf32>
    %97 = tpu.matmul %94, %95, %cst_75 {dimension_numbers = #tpu.dot_dimension_numbers<[1], [0], [0], [1], [0, 0, 1, 1], [], []>} : vector<16x128xbf16>, vector<128x128xbf16>, vector<16x128xf32> -> vector<16x128xf32>
    %98 = vector.broadcast %96 : vector<1x128xf32> to vector<16x128xf32>
    %99 = arith.addf %97, %98 : vector<16x128xf32>
    %100 = vector.extract_strided_slice %0 {offsets = [0, 3], sizes = [16, 1], strides = [1, 1]} : vector<16x4xf32> to vector<16x1xf32>
    %101 = vector.broadcast %100 : vector<16x1xf32> to vector<16x128xf32>
    %102 = arith.mulf %99, %101 : vector<16x128xf32>
    %103 = arith.addf %77, %102 : vector<16x128xf32>
    %104 = arith.truncf %103 : vector<16x128xf32> to vector<16x128xbf16>
    %c0_76 = arith.constant 0 : index
    %c0_77 = arith.constant 0 : index
    %105 = vector.load %arg12[%c0_76, %c0_77] : memref<16x128xbf16, #tpu.memory_space<vmem>>, vector<16x128xbf16>
    tpu.vector_store %arg12[%c0_76, %c0_77], %104 {strides = array<i32>} : memref<16x128xbf16, #tpu.memory_space<vmem>>, vector<16x128xbf16>,
    return
  }
  func.func @transform_0(%arg0: i32) -> (i32, i32) {
    %c0_i32 = arith.constant 0 : i32
    %c0_i32_0 = arith.constant 0 : i32
    return %arg0, %c0_i32 : i32, i32
  }
  func.func @transform_1(%arg0: i32) -> (i32, i32) {
    %c0_i32 = arith.constant 0 : i32
    %c0_i32_0 = arith.constant 0 : i32
    return %arg0, %c0_i32 : i32, i32
  }
  func.func @transform_2(%arg0: i32) -> (i32, i32) {
    %c0_i32 = arith.constant 0 : i32
    %c0_i32_0 = arith.constant 0 : i32
    return %arg0, %c0_i32 : i32, i32
  }
  func.func @transform_3(%arg0: i32) -> (i32, i32) {
    %c0_i32 = arith.constant 0 : i32
    %c0_i32_0 = arith.constant 0 : i32
    return %arg0, %c0_i32 : i32, i32
  }
  func.func @transform_4(%arg0: i32) -> (i32, i32) {
    %c0_i32 = arith.constant 0 : i32
    %c0_i32_0 = arith.constant 0 : i32
    return %arg0, %c0_i32 : i32, i32
  }
  func.func @transform_5(%arg0: i32) -> (i32, i32) {
    %c0_i32 = arith.constant 0 : i32
    %c0_i32_0 = arith.constant 0 : i32
    %c0_i32_1 = arith.constant 0 : i32
    return %c0_i32, %c0_i32_0 : i32, i32
  }
  func.func @transform_6(%arg0: i32) -> (i32, i32) {
    %c0_i32 = arith.constant 0 : i32
    %c0_i32_0 = arith.constant 0 : i32
    %c0_i32_1 = arith.constant 0 : i32
    return %c0_i32, %c0_i32_0 : i32, i32
  }
  func.func @transform_7(%arg0: i32) -> (i32, i32) {
    %c0_i32 = arith.constant 0 : i32
    %c0_i32_0 = arith.constant 0 : i32
    %c0_i32_1 = arith.constant 0 : i32
    return %c0_i32, %c0_i32_0 : i32, i32
  }
  func.func @transform_8(%arg0: i32) -> (i32, i32) {
    %c0_i32 = arith.constant 0 : i32
    %c0_i32_0 = arith.constant 0 : i32
    %c0_i32_1 = arith.constant 0 : i32
    return %c0_i32, %c0_i32_0 : i32, i32
  }
  func.func @transform_9(%arg0: i32) -> (i32, i32) {
    %c0_i32 = arith.constant 0 : i32
    %c0_i32_0 = arith.constant 0 : i32
    %c0_i32_1 = arith.constant 0 : i32
    return %c0_i32, %c0_i32_0 : i32, i32
  }
  func.func @transform_10(%arg0: i32) -> (i32, i32) {
    %c0_i32 = arith.constant 0 : i32
    %c0_i32_0 = arith.constant 0 : i32
    %c0_i32_1 = arith.constant 0 : i32
    return %c0_i32, %c0_i32_0 : i32, i32
  }
  func.func @transform_11(%arg0: i32) -> (i32, i32) {
    %c0_i32 = arith.constant 0 : i32
    %c0_i32_0 = arith.constant 0 : i32
    return %arg0, %c0_i32 : i32, i32
  }
}

</mosaic_0001>

<llo_original>
// kernel: mlp_module_forward.1
$region0: #{mlp_module_forward.1}
  #allocation0 [shape = 'u32[]', space=smem, size = 0x4, offset = 0x4, fixed_abs, tag = 'smem constant byte address 0x4 - core index']
  #allocation1 [shape = 'u32[144,128]{1,0:T(1,128)}', space=vmem, size = 0x12000, scoped, tag = 'internal scratch']
  %s0 = inlined_call_operand.vmem [shape: bf16[16,8], index: 0, kind: input, shape index: {}]
  %s1 = inlined_call_operand.vmem [shape: bf16[16,8], index: 1, kind: input, shape index: {}]
  %s2 = inlined_call_operand.vmem [shape: bf16[16,8], index: 2, kind: input, shape index: {}]
  %s3 = inlined_call_operand.vmem [shape: bf16[16,8], index: 3, kind: input, shape index: {}]
  %s4 = inlined_call_operand.vmem [shape: f32[16,4], index: 4, kind: input, shape index: {}]
  %s5 = inlined_call_operand.vmem [shape: bf16[8,128], index: 5, kind: input, shape index: {}]
  %s6 = inlined_call_operand.vmem [shape: f32[1,128], index: 6, kind: input, shape index: {}]
  %s7 = inlined_call_operand.vmem [shape: bf16[128,128], index: 7, kind: input, shape index: {}]
  %s8 = inlined_call_operand.vmem [shape: f32[1,128], index: 8, kind: input, shape index: {}]
  %s9 = inlined_call_operand.vmem [shape: bf16[128,128], index: 9, kind: input, shape index: {}]
  %s10 = inlined_call_operand.vmem [shape: f32[1,128], index: 10, kind: input, shape index: {}]
  %s11 = inlined_call_operand.vmem [shape: bf16[16,128], index: 11, kind: output, shape index: {}]
  %s12 = sld [smem:[#allocation0]]
  $region54: #{mlp_module_forward.1} parent=0
    _
  %s14 = ssub.s32 1, %s12
  %s15 = scalar_select 0, %s14, %s12
  // Predicated region
  $region2: #{mlp_module_forward.1} parent=0 // pred_check
    _
  $region3: #{mlp_module_forward.1} parent=0 // pred_check_branch
    %17 = sbr.rel (0) target = $region5
  $region4: #{mlp_module_forward.1} parent=0 // pred_region
    _
  $region5: #{mlp_module_forward.1} parent=0 // pred_fallthru
    _
  // Predicated region
  $region6: #{mlp_module_forward.1} parent=0 // pred_check
    _
  $region7: #{mlp_module_forward.1} parent=0 // pred_check_branch
    %19 = sbr.rel (0) target = $region9
  $region8: #{mlp_module_forward.1} parent=0 // pred_region
    _
  $region9: #{mlp_module_forward.1} parent=0 // pred_fallthru
    _
  // Predicated region
  $region10: #{mlp_module_forward.1} parent=0 // pred_check
    _
  $region11: #{mlp_module_forward.1} parent=0 // pred_check_branch
    %21 = sbr.rel (0) target = $region13
  $region12: #{mlp_module_forward.1} parent=0 // pred_region
    _
  $region13: #{mlp_module_forward.1} parent=0 // pred_fallthru
    _
  // Predicated region
  $region14: #{mlp_module_forward.1} parent=0 // pred_check
    _
  $region15: #{mlp_module_forward.1} parent=0 // pred_check_branch
    %23 = sbr.rel (0) target = $region17
  $region16: #{mlp_module_forward.1} parent=0 // pred_region
    _
  $region17: #{mlp_module_forward.1} parent=0 // pred_fallthru
    _
  // Predicated region
  $region18: #{mlp_module_forward.1} parent=0 // pred_check
    _
  $region19: #{mlp_module_forward.1} parent=0 // pred_check_branch
    %25 = sbr.rel (0) target = $region21
  $region20: #{mlp_module_forward.1} parent=0 // pred_region
    _
  $region21: #{mlp_module_forward.1} parent=0 // pred_fallthru
    _
  // Predicated region
  $region22: #{mlp_module_forward.1} parent=0 // pred_check
    _
  $region23: #{mlp_module_forward.1} parent=0 // pred_check_branch
    %27 = sbr.rel (0) target = $region25
  $region24: #{mlp_module_forward.1} parent=0 // pred_region
    _
  $region25: #{mlp_module_forward.1} parent=0 // pred_fallthru
    _
  // Predicated region
  $region26: #{mlp_module_forward.1} parent=0 // pred_check
    _
  $region27: #{mlp_module_forward.1} parent=0 // pred_check_branch
    %29 = sbr.rel (0) target = $region29
  $region28: #{mlp_module_forward.1} parent=0 // pred_region
    _
  $region29: #{mlp_module_forward.1} parent=0 // pred_fallthru
    _
  // Predicated region
  $region30: #{mlp_module_forward.1} parent=0 // pred_check
    _
  $region31: #{mlp_module_forward.1} parent=0 // pred_check_branch
    %31 = sbr.rel (0) target = $region33
  $region32: #{mlp_module_forward.1} parent=0 // pred_region
    _
  $region33: #{mlp_module_forward.1} parent=0 // pred_fallthru
    _
  // Predicated region
  $region34: #{mlp_module_forward.1} parent=0 // pred_check
    _
  $region35: #{mlp_module_forward.1} parent=0 // pred_check_branch
    %33 = sbr.rel (0) target = $region37
  $region36: #{mlp_module_forward.1} parent=0 // pred_region
    _
  $region37: #{mlp_module_forward.1} parent=0 // pred_fallthru
    _
  // Predicated region
  $region38: #{mlp_module_forward.1} parent=0 // pred_check
    _
  $region39: #{mlp_module_forward.1} parent=0 // pred_check_branch
    %35 = sbr.rel (0) target = $region41
  $region40: #{mlp_module_forward.1} parent=0 // pred_region
    _
  $region41: #{mlp_module_forward.1} parent=0 // pred_fallthru
    _
  // Predicated region
  $region42: #{mlp_module_forward.1} parent=0 // pred_check
    _
  $region43: #{mlp_module_forward.1} parent=0 // pred_check_branch
    %37 = sbr.rel (0) target = $region45
  $region44: #{mlp_module_forward.1} parent=0 // pred_region
    _
  $region45: #{mlp_module_forward.1} parent=0 // pred_fallthru
    _
  %v39 = vld [vmem:[%s4] sm:$0xff]
  %v40 = vld [vmem:[%s4 + $0x8] sm:$0xff]
  %v41 = vld [vmem:[%s0] sm:$0xf]
  %v42 = vld [vmem:[%s0 + $0x4] sm:$0xf]
  %v43 = vld [vmem:[%s5] sm:$0xf]
  %v44 = vld [vmem:[%s6] sm:$0x1]
  %v46 = vlaneseq
  %v47 = vshrl.u32 %v46, 7
  %v48 = vsub.s32 0, %v47
  %v49 = vrot.slane %v44, %v48
  %v53 = vunpack.c.l.b16 %v41
  %v54 = vunpack.c.l.b16 %v42
  %v55 = vpack.c.b16 %v54, %v53
  %vm56 = vcmask 64512
  %v58 = vsel %vm56, %v55, 0
  %vm60 = vcmask 1043456
  %v62 = vsel %vm60, %v43, 0
  %64 = vmatprep.subr.bf16.mxu0 0
  %65 = vmatpush1.bf16.msra.mxu0 0
  %66 = vmatprep.subr.bf16.mxu0 0
  %67 = vmatpush1.bf16.msra.mxu0 0
  %68 = vmatprep.subr.bf16.mxu0 0
  %69 = vmatpush1.bf16.msra.mxu0 0
  %70 = vmatprep.subr.bf16.mxu0 0
  %71 = vmatpush1.bf16.msra.mxu0 0
  %72 = vmatprep.subr.bf16.mxu0 0
  %73 = vmatpush1.bf16.msra.mxu0 0
  %74 = vmatprep.subr.bf16.mxu0 0
  %75 = vmatpush1.bf16.msra.mxu0 0
  %76 = vmatprep.subr.bf16.mxu0 0
  %77 = vmatpush1.bf16.msra.mxu0 0
  %78 = vmatprep.subr.bf16.mxu0 0
  %79 = vmatpush1.bf16.msra.mxu0 %v62
  %80 = vmatprep.subr.bf16.mxu0 0
  %81 = vmatpush2.bf16.msra.mxu0 0
  %82 = vmatprep.subr.bf16.mxu0 0
  %83 = vmatpush2.bf16.msra.mxu0 0
  %84 = vmatprep.subr.bf16.mxu0 0
  %85 = vmatpush2.bf16.msra.mxu0 0
  %86 = vmatprep.subr.bf16.mxu0 0
  %87 = vmatpush2.bf16.msra.mxu0 0
  %88 = vmatprep.subr.bf16.mxu0 0
  %89 = vmatpush2.bf16.msra.mxu0 0
  %90 = vmatprep.subr.bf16.mxu0 0
  %91 = vmatpush2.bf16.msra.mxu0 0
  %92 = vmatprep.subr.bf16.mxu0 0
  %93 = vmatpush2.bf16.msra.mxu0 0
  %94 = vmatprep.subr.bf16.mxu0 0
  %95 = vmatpush2.bf16.msra.mxu0 0
  %96 = vmatprep.mubr.bf16.mxu0 0
  %97 = vmatmul.mubr.bf16.gmra.mxu0 %v58
  %v98 = vpop.f32.mrf.mxu0
  %v99 = vadd.f32 %v49, %v98
  %v100 = vpop.f32.mrf.mxu0
  %v101 = vpop.f32.mrf.mxu0
  %v102 = vadd.f32 %v49, %v101
  %v103 = vpop.f32.mrf.mxu0
  %104 = vdwg.mxu0
  %v105 = vmax.f32 %v99, 0.0
  %v106 = vmax.f32 %v102, 0.0
  %v107 = vpack.c.bf16 %v106, %v105
  %v108 = vld [vmem:[%s7] sm:$0xf]
  %v109 = vld [vmem:[%s7 + $0x4] sm:$0xf]
  %v110 = vld [vmem:[%s7 + $0x8] sm:$0xf]
  %v111 = vld [vmem:[%s7 + $0xc] sm:$0xf]
  %v112 = vld [vmem:[%s7 + $0x10] sm:$0xf]
  %v113 = vld [vmem:[%s7 + $0x14] sm:$0xf]
  %v114 = vld [vmem:[%s7 + $0x18] sm:$0xf]
  %v115 = vld [vmem:[%s7 + $0x1c] sm:$0xf]
  %v116 = vld [vmem:[%s7 + $0x20] sm:$0xf]
  %v117 = vld [vmem:[%s7 + $0x24] sm:$0xf]
  %v118 = vld [vmem:[%s7 + $0x28] sm:$0xf]
  %v119 = vld [vmem:[%s7 + $0x2c] sm:$0xf]
  %v120 = vld [vmem:[%s7 + $0x30] sm:$0xf]
  %v121 = vld [vmem:[%s7 + $0x34] sm:$0xf]
  %v122 = vld [vmem:[%s7 + $0x38] sm:$0xf]
  %v123 = vld [vmem:[%s7 + $0x3c] sm:$0xf]
  %v124 = vld [vmem:[%s8] sm:$0x1]
  %v126 = vlaneseq
  %v127 = vshrl.u32 %v126, 7
  %v128 = vsub.s32 0, %v127
  %v129 = vrot.slane %v124, %v128
  %v147 = vunpack.c.l.b16 %v108
  %v148 = vunpack.c.l.b16 %v109
  %v149 = vunpack.c.l.b16 %v110
  %v150 = vunpack.c.l.b16 %v111
  %v151 = vunpack.c.l.b16 %v112
  %v152 = vunpack.c.l.b16 %v113
  %v153 = vunpack.c.l.b16 %v114
  %v154 = vunpack.c.l.b16 %v115
  %v155 = vunpack.c.l.b16 %v116
  %v156 = vunpack.c.l.b16 %v117
  %v157 = vunpack.c.l.b16 %v118
  %v158 = vunpack.c.l.b16 %v119
  %v159 = vunpack.c.l.b16 %v120
  %v160 = vunpack.c.l.b16 %v121
  %v161 = vunpack.c.l.b16 %v122
  %v162 = vunpack.c.l.b16 %v123
  %v163 = vpack.c.b16 %v148, %v147
  %v164 = vpack.c.b16 %v150, %v149
  %v165 = vpack.c.b16 %v152, %v151
  %v166 = vpack.c.b16 %v154, %v153
  %v167 = vpack.c.b16 %v156, %v155
  %v168 = vpack.c.b16 %v158, %v157
  %v169 = vpack.c.b16 %v160, %v159
  %v170 = vpack.c.b16 %v162, %v161
  %179 = vmatprep.subr.bf16.mxu0 0
  %180 = vmatpush1.bf16.msra.mxu0 %v170
  %181 = vmatprep.subr.bf16.mxu0 0
  %182 = vmatpush1.bf16.msra.mxu0 %v169
  %183 = vmatprep.subr.bf16.mxu0 0
  %184 = vmatpush1.bf16.msra.mxu0 %v168
  %185 = vmatprep.subr.bf16.mxu0 0
  %186 = vmatpush1.bf16.msra.mxu0 %v167
  %187 = vmatprep.subr.bf16.mxu0 0
  %188 = vmatpush1.bf16.msra.mxu0 %v166
  %189 = vmatprep.subr.bf16.mxu0 0
  %190 = vmatpush1.bf16.msra.mxu0 %v165
  %191 = vmatprep.subr.bf16.mxu0 0
  %192 = vmatpush1.bf16.msra.mxu0 %v164
  %193 = vmatprep.subr.bf16.mxu0 0
  %194 = vmatpush1.bf16.msra.mxu0 %v163
  %195 = vmatprep.subr.bf16.mxu0 0
  %196 = vmatpush2.bf16.msra.mxu0 0
  %197 = vmatprep.subr.bf16.mxu0 0
  %198 = vmatpush2.bf16.msra.mxu0 0
  %199 = vmatprep.subr.bf16.mxu0 0
  %200 = vmatpush2.bf16.msra.mxu0 0
  %201 = vmatprep.subr.bf16.mxu0 0
  %202 = vmatpush2.bf16.msra.mxu0 0
  %203 = vmatprep.subr.bf16.mxu0 0
  %204 = vmatpush2.bf16.msra.mxu0 0
  %205 = vmatprep.subr.bf16.mxu0 0
  %206 = vmatpush2.bf16.msra.mxu0 0
  %207 = vmatprep.subr.bf16.mxu0 0
  %208 = vmatpush2.bf16.msra.mxu0 0
  %209 = vmatprep.subr.bf16.mxu0 0
  %210 = vmatpush2.bf16.msra.mxu0 0
  %211 = vmatprep.mubr.bf16.mxu0 0
  %212 = vmatmul.mubr.bf16.gmra.mxu0 %v107
  %v213 = vpop.f32.mrf.mxu0
  %v214 = vadd.f32 %v129, %v213
  %v215 = vpop.f32.mrf.mxu0
  %v216 = vpop.f32.mrf.mxu0
  %v217 = vadd.f32 %v129, %v216
  %v218 = vpop.f32.mrf.mxu0
  %219 = vdwg.mxu0
  %v220 = vmax.f32 %v214, 0.0
  %v221 = vmax.f32 %v217, 0.0
  %v222 = vpack.c.bf16 %v221, %v220
  %v223 = vld [vmem:[%s9] sm:$0xf]
  %v224 = vld [vmem:[%s9 + $0x4] sm:$0xf]
  %v225 = vld [vmem:[%s9 + $0x8] sm:$0xf]
  %v226 = vld [vmem:[%s9 + $0xc] sm:$0xf]
  %v227 = vld [vmem:[%s9 + $0x10] sm:$0xf]
  %v228 = vld [vmem:[%s9 + $0x14] sm:$0xf]
  %v229 = vld [vmem:[%s9 + $0x18] sm:$0xf]
  %v230 = vld [vmem:[%s9 + $0x1c] sm:$0xf]
  %v231 = vld [vmem:[%s9 + $0x20] sm:$0xf]
  %v232 = vld [vmem:[%s9 + $0x24] sm:$0xf]
  %v233 = vld [vmem:[%s9 + $0x28] sm:$0xf]
  %v234 = vld [vmem:[%s9 + $0x2c] sm:$0xf]
  %v235 = vld [vmem:[%s9 + $0x30] sm:$0xf]
  %v236 = vld [vmem:[%s9 + $0x34] sm:$0xf]
  %v237 = vld [vmem:[%s9 + $0x38] sm:$0xf]
  %v238 = vld [vmem:[%s9 + $0x3c] sm:$0xf]
  %v239 = vld [vmem:[%s10] sm:$0x1]
  %v241 = vlaneseq
  %v242 = vshrl.u32 %v241, 7
  %v243 = vsub.s32 0, %v242
  %v244 = vrot.slane %v239, %v243
  %v262 = vunpack.c.l.b16 %v223
  %v263 = vunpack.c.l.b16 %v224
  %v264 = vunpack.c.l.b16 %v225
  %v265 = vunpack.c.l.b16 %v226
  %v266 = vunpack.c.l.b16 %v227
  %v267 = vunpack.c.l.b16 %v228
  %v268 = vunpack.c.l.b16 %v229
  %v269 = vunpack.c.l.b16 %v230
  %v270 = vunpack.c.l.b16 %v231
  %v271 = vunpack.c.l.b16 %v232
  %v272 = vunpack.c.l.b16 %v233
  %v273 = vunpack.c.l.b16 %v234
  %v274 = vunpack.c.l.b16 %v235
  %v275 = vunpack.c.l.b16 %v236
  %v276 = vunpack.c.l.b16 %v237
  %v277 = vunpack.c.l.b16 %v238
  %v278 = vpack.c.b16 %v263, %v262
  %v279 = vpack.c.b16 %v265, %v264
  %v280 = vpack.c.b16 %v267, %v266
  %v281 = vpack.c.b16 %v269, %v268
  %v282 = vpack.c.b16 %v271, %v270
  %v283 = vpack.c.b16 %v273, %v272
  %v284 = vpack.c.b16 %v275, %v274
  %v285 = vpack.c.b16 %v277, %v276
  %294 = vmatprep.subr.bf16.mxu0 0
  %295 = vmatpush1.bf16.msra.mxu0 %v285
  %296 = vmatprep.subr.bf16.mxu0 0
  %297 = vmatpush1.bf16.msra.mxu0 %v284
  %298 = vmatprep.subr.bf16.mxu0 0
  %299 = vmatpush1.bf16.msra.mxu0 %v283
  %300 = vmatprep.subr.bf16.mxu0 0
  %301 = vmatpush1.bf16.msra.mxu0 %v282
  %302 = vmatprep.subr.bf16.mxu0 0
  %303 = vmatpush1.bf16.msra.mxu0 %v281
  %304 = vmatprep.subr.bf16.mxu0 0
  %305 = vmatpush1.bf16.msra.mxu0 %v280
  %306 = vmatprep.subr.bf16.mxu0 0
  %307 = vmatpush1.bf16.msra.mxu0 %v279
  %308 = vmatprep.subr.bf16.mxu0 0
  %309 = vmatpush1.bf16.msra.mxu0 %v278
  %310 = vmatprep.subr.bf16.mxu0 0
  %311 = vmatpush2.bf16.msra.mxu0 0
  %312 = vmatprep.subr.bf16.mxu0 0
  %313 = vmatpush2.bf16.msra.mxu0 0
  %314 = vmatprep.subr.bf16.mxu0 0
  %315 = vmatpush2.bf16.msra.mxu0 0
  %316 = vmatprep.subr.bf16.mxu0 0
  %317 = vmatpush2.bf16.msra.mxu0 0
  %318 = vmatprep.subr.bf16.mxu0 0
  %319 = vmatpush2.bf16.msra.mxu0 0
  %320 = vmatprep.subr.bf16.mxu0 0
  %321 = vmatpush2.bf16.msra.mxu0 0
  %322 = vmatprep.subr.bf16.mxu0 0
  %323 = vmatpush2.bf16.msra.mxu0 0
  %324 = vmatprep.subr.bf16.mxu0 0
  %325 = vmatpush2.bf16.msra.mxu0 0
  %326 = vmatprep.mubr.bf16.mxu0 0
  %327 = vmatmul.mubr.bf16.gmra.mxu0 %v222
  %v328 = vpop.f32.mrf.mxu0
  %v329 = vadd.f32 %v244, %v328
  %v330 = vpop.f32.mrf.mxu0
  %v331 = vpop.f32.mrf.mxu0
  %v332 = vadd.f32 %v244, %v331
  %v333 = vpop.f32.mrf.mxu0
  %334 = vdwg.mxu0
  %336 = vset.pattern.permute.xlu0 0
  %337 = vperm.xlu0 %336, %v39
  %v338 = vpop.permute.xlu0 %337
  %341 = vset.pattern.permute.xlu0 0
  %342 = vperm.xlu0 %341, %v40
  %v343 = vpop.permute.xlu0 %342
  %v345 = vmul.f32 %v329, %v338
  %v346 = vmul.f32 %v332, %v343
  %v347 = vld [vmem:[%s1] sm:$0xf]
  %v348 = vld [vmem:[%s1 + $0x4] sm:$0xf]
  %v351 = vunpack.c.l.b16 %v347
  %v352 = vunpack.c.l.b16 %v348
  %v353 = vpack.c.b16 %v352, %v351
  %v355 = vsel %vm56, %v353, 0
  %357 = vmatprep.subr.bf16.mxu0 0
  %358 = vmatpush1.bf16.msra.mxu0 0
  %359 = vmatprep.subr.bf16.mxu0 0
  %360 = vmatpush1.bf16.msra.mxu0 0
  %361 = vmatprep.subr.bf16.mxu0 0
  %362 = vmatpush1.bf16.msra.mxu0 0
  %363 = vmatprep.subr.bf16.mxu0 0
  %364 = vmatpush1.bf16.msra.mxu0 0
  %365 = vmatprep.subr.bf16.mxu0 0
  %366 = vmatpush1.bf16.msra.mxu0 0
  %367 = vmatprep.subr.bf16.mxu0 0
  %368 = vmatpush1.bf16.msra.mxu0 0
  %369 = vmatprep.subr.bf16.mxu0 0
  %370 = vmatpush1.bf16.msra.mxu0 0
  %371 = vmatprep.subr.bf16.mxu0 0
  %372 = vmatpush1.bf16.msra.mxu0 %v62
  %373 = vmatprep.subr.bf16.mxu0 0
  %374 = vmatpush2.bf16.msra.mxu0 0
  %375 = vmatprep.subr.bf16.mxu0 0
  %376 = vmatpush2.bf16.msra.mxu0 0
  %377 = vmatprep.subr.bf16.mxu0 0
  %378 = vmatpush2.bf16.msra.mxu0 0
  %379 = vmatprep.subr.bf16.mxu0 0
  %380 = vmatpush2.bf16.msra.mxu0 0
  %381 = vmatprep.subr.bf16.mxu0 0
  %382 = vmatpush2.bf16.msra.mxu0 0
  %383 = vmatprep.subr.bf16.mxu0 0
  %384 = vmatpush2.bf16.msra.mxu0 0
  %385 = vmatprep.subr.bf16.mxu0 0
  %386 = vmatpush2.bf16.msra.mxu0 0
  %387 = vmatprep.subr.bf16.mxu0 0
  %388 = vmatpush2.bf16.msra.mxu0 0
  %389 = vmatprep.mubr.bf16.mxu0 0
  %390 = vmatmul.mubr.bf16.gmra.mxu0 %v355
  %v391 = vpop.f32.mrf.mxu0
  %v392 = vadd.f32 %v49, %v391
  %v393 = vpop.f32.mrf.mxu0
  %v394 = vpop.f32.mrf.mxu0
  %v395 = vadd.f32 %v49, %v394
  %v396 = vpop.f32.mrf.mxu0
  %397 = vdwg.mxu0
  %v398 = vmax.f32 %v392, 0.0
  %v399 = vmax.f32 %v395, 0.0
  %v400 = vpack.c.bf16 %v399, %v398
  %401 = vmatprep.subr.bf16.mxu0 0
  %402 = vmatpush1.bf16.msra.mxu0 %v170
  %403 = vmatprep.subr.bf16.mxu0 0
  %404 = vmatpush1.bf16.msra.mxu0 %v169
  %405 = vmatprep.subr.bf16.mxu0 0
  %406 = vmatpush1.bf16.msra.mxu0 %v168
  %407 = vmatprep.subr.bf16.mxu0 0
  %408 = vmatpush1.bf16.msra.mxu0 %v167
  %409 = vmatprep.subr.bf16.mxu0 0
  %410 = vmatpush1.bf16.msra.mxu0 %v166
  %411 = vmatprep.subr.bf16.mxu0 0
  %412 = vmatpush1.bf16.msra.mxu0 %v165
  %413 = vmatprep.subr.bf16.mxu0 0
  %414 = vmatpush1.bf16.msra.mxu0 %v164
  %415 = vmatprep.subr.bf16.mxu0 0
  %416 = vmatpush1.bf16.msra.mxu0 %v163
  %417 = vmatprep.subr.bf16.mxu0 0
  %418 = vmatpush2.bf16.msra.mxu0 0
  %419 = vmatprep.subr.bf16.mxu0 0
  %420 = vmatpush2.bf16.msra.mxu0 0
  %421 = vmatprep.subr.bf16.mxu0 0
  %422 = vmatpush2.bf16.msra.mxu0 0
  %423 = vmatprep.subr.bf16.mxu0 0
  %424 = vmatpush2.bf16.msra.mxu0 0
  %425 = vmatprep.subr.bf16.mxu0 0
  %426 = vmatpush2.bf16.msra.mxu0 0
  %427 = vmatprep.subr.bf16.mxu0 0
  %428 = vmatpush2.bf16.msra.mxu0 0
  %429 = vmatprep.subr.bf16.mxu0 0
  %430 = vmatpush2.bf16.msra.mxu0 0
  %431 = vmatprep.subr.bf16.mxu0 0
  %432 = vmatpush2.bf16.msra.mxu0 0
  %433 = vmatprep.mubr.bf16.mxu0 0
  %434 = vmatmul.mubr.bf16.gmra.mxu0 %v400
  %v435 = vpop.f32.mrf.mxu0
  %v436 = vadd.f32 %v129, %v435
  %v437 = vpop.f32.mrf.mxu0
  %v438 = vpop.f32.mrf.mxu0
  %v439 = vadd.f32 %v129, %v438
  %v440 = vpop.f32.mrf.mxu0
  %441 = vdwg.mxu0
  %v442 = vmax.f32 %v436, 0.0
  %v443 = vmax.f32 %v439, 0.0
  %v444 = vpack.c.bf16 %v443, %v442
  %445 = vmatprep.subr.bf16.mxu0 0
  %446 = vmatpush1.bf16.msra.mxu0 %v285
  %447 = vmatprep.subr.bf16.mxu0 0
  %448 = vmatpush1.bf16.msra.mxu0 %v284
  %449 = vmatprep.subr.bf16.mxu0 0
  %450 = vmatpush1.bf16.msra.mxu0 %v283
  %451 = vmatprep.subr.bf16.mxu0 0
  %452 = vmatpush1.bf16.msra.mxu0 %v282
  %453 = vmatprep.subr.bf16.mxu0 0
  %454 = vmatpush1.bf16.msra.mxu0 %v281
  %455 = vmatprep.subr.bf16.mxu0 0
  %456 = vmatpush1.bf16.msra.mxu0 %v280
  %457 = vmatprep.subr.bf16.mxu0 0
  %458 = vmatpush1.bf16.msra.mxu0 %v279
  %459 = vmatprep.subr.bf16.mxu0 0
  %460 = vmatpush1.bf16.msra.mxu0 %v278
  %461 = vmatprep.subr.bf16.mxu0 0
  %462 = vmatpush2.bf16.msra.mxu0 0
  %463 = vmatprep.subr.bf16.mxu0 0
  %464 = vmatpush2.bf16.msra.mxu0 0
  %465 = vmatprep.subr.bf16.mxu0 0
  %466 = vmatpush2.bf16.msra.mxu0 0
  %467 = vmatprep.subr.bf16.mxu0 0
  %468 = vmatpush2.bf16.msra.mxu0 0
  %469 = vmatprep.subr.bf16.mxu0 0
  %470 = vmatpush2.bf16.msra.mxu0 0
  %471 = vmatprep.subr.bf16.mxu0 0
  %472 = vmatpush2.bf16.msra.mxu0 0
  %473 = vmatprep.subr.bf16.mxu0 0
  %474 = vmatpush2.bf16.msra.mxu0 0
  %475 = vmatprep.subr.bf16.mxu0 0
  %476 = vmatpush2.bf16.msra.mxu0 0
  %477 = vmatprep.mubr.bf16.mxu0 0
  %478 = vmatmul.mubr.bf16.gmra.mxu0 %v444
  %v479 = vpop.f32.mrf.mxu0
  %v480 = vadd.f32 %v244, %v479
  %v481 = vpop.f32.mrf.mxu0
  %v482 = vpop.f32.mrf.mxu0
  %v483 = vadd.f32 %v244, %v482
  %v484 = vpop.f32.mrf.mxu0
  %485 = vdwg.mxu0
  %486 = vset.pattern.permute.xlu0 1
  %487 = vperm.xlu0 %486, %v39
  %v488 = vpop.permute.xlu0 %487
  %490 = vset.pattern.permute.xlu0 1
  %491 = vperm.xlu0 %490, %v40
  %v492 = vpop.permute.xlu0 %491
  %v494 = vmul.f32 %v480, %v488
  %v495 = vmul.f32 %v483, %v492
  %v496 = vadd.f32 %v345, %v494
  %v497 = vadd.f32 %v346, %v495
  %v498 = vld [vmem:[%s2] sm:$0xf]
  %v499 = vld [vmem:[%s2 + $0x4] sm:$0xf]
  %v502 = vunpack.c.l.b16 %v498
  %v503 = vunpack.c.l.b16 %v499
  %v504 = vpack.c.b16 %v503, %v502
  %v506 = vsel %vm56, %v504, 0
  %508 = vmatprep.subr.bf16.mxu0 0
  %509 = vmatpush1.bf16.msra.mxu0 0
  %510 = vmatprep.subr.bf16.mxu0 0
  %511 = vmatpush1.bf16.msra.mxu0 0
  %512 = vmatprep.subr.bf16.mxu0 0
  %513 = vmatpush1.bf16.msra.mxu0 0
  %514 = vmatprep.subr.bf16.mxu0 0
  %515 = vmatpush1.bf16.msra.mxu0 0
  %516 = vmatprep.subr.bf16.mxu0 0
  %517 = vmatpush1.bf16.msra.mxu0 0
  %518 = vmatprep.subr.bf16.mxu0 0
  %519 = vmatpush1.bf16.msra.mxu0 0
  %520 = vmatprep.subr.bf16.mxu0 0
  %521 = vmatpush1.bf16.msra.mxu0 0
  %522 = vmatprep.subr.bf16.mxu0 0
  %523 = vmatpush1.bf16.msra.mxu0 %v62
  %524 = vmatprep.subr.bf16.mxu0 0
  %525 = vmatpush2.bf16.msra.mxu0 0
  %526 = vmatprep.subr.bf16.mxu0 0
  %527 = vmatpush2.bf16.msra.mxu0 0
  %528 = vmatprep.subr.bf16.mxu0 0
  %529 = vmatpush2.bf16.msra.mxu0 0
  %530 = vmatprep.subr.bf16.mxu0 0
  %531 = vmatpush2.bf16.msra.mxu0 0
  %532 = vmatprep.subr.bf16.mxu0 0
  %533 = vmatpush2.bf16.msra.mxu0 0
  %534 = vmatprep.subr.bf16.mxu0 0
  %535 = vmatpush2.bf16.msra.mxu0 0
  %536 = vmatprep.subr.bf16.mxu0 0
  %537 = vmatpush2.bf16.msra.mxu0 0
  %538 = vmatprep.subr.bf16.mxu0 0
  %539 = vmatpush2.bf16.msra.mxu0 0
  %540 = vmatprep.mubr.bf16.mxu0 0
  %541 = vmatmul.mubr.bf16.gmra.mxu0 %v506
  %v542 = vpop.f32.mrf.mxu0
  %v543 = vadd.f32 %v49, %v542
  %v544 = vpop.f32.mrf.mxu0
  %v545 = vpop.f32.mrf.mxu0
  %v546 = vadd.f32 %v49, %v545
  %v547 = vpop.f32.mrf.mxu0
  %548 = vdwg.mxu0
  %v549 = vmax.f32 %v543, 0.0
  %v550 = vmax.f32 %v546, 0.0
  %v551 = vpack.c.bf16 %v550, %v549
  %552 = vmatprep.subr.bf16.mxu0 0
  %553 = vmatpush1.bf16.msra.mxu0 %v170
  %554 = vmatprep.subr.bf16.mxu0 0
  %555 = vmatpush1.bf16.msra.mxu0 %v169
  %556 = vmatprep.subr.bf16.mxu0 0
  %557 = vmatpush1.bf16.msra.mxu0 %v168
  %558 = vmatprep.subr.bf16.mxu0 0
  %559 = vmatpush1.bf16.msra.mxu0 %v167
  %560 = vmatprep.subr.bf16.mxu0 0
  %561 = vmatpush1.bf16.msra.mxu0 %v166
  %562 = vmatprep.subr.bf16.mxu0 0
  %563 = vmatpush1.bf16.msra.mxu0 %v165
  %564 = vmatprep.subr.bf16.mxu0 0
  %565 = vmatpush1.bf16.msra.mxu0 %v164
  %566 = vmatprep.subr.bf16.mxu0 0
  %567 = vmatpush1.bf16.msra.mxu0 %v163
  %568 = vmatprep.subr.bf16.mxu0 0
  %569 = vmatpush2.bf16.msra.mxu0 0
  %570 = vmatprep.subr.bf16.mxu0 0
  %571 = vmatpush2.bf16.msra.mxu0 0
  %572 = vmatprep.subr.bf16.mxu0 0
  %573 = vmatpush2.bf16.msra.mxu0 0
  %574 = vmatprep.subr.bf16.mxu0 0
  %575 = vmatpush2.bf16.msra.mxu0 0
  %576 = vmatprep.subr.bf16.mxu0 0
  %577 = vmatpush2.bf16.msra.mxu0 0
  %578 = vmatprep.subr.bf16.mxu0 0
  %579 = vmatpush2.bf16.msra.mxu0 0
  %580 = vmatprep.subr.bf16.mxu0 0
  %581 = vmatpush2.bf16.msra.mxu0 0
  %582 = vmatprep.subr.bf16.mxu0 0
  %583 = vmatpush2.bf16.msra.mxu0 0
  %584 = vmatprep.mubr.bf16.mxu0 0
  %585 = vmatmul.mubr.bf16.gmra.mxu0 %v551
  %v586 = vpop.f32.mrf.mxu0
  %v587 = vadd.f32 %v129, %v586
  %v588 = vpop.f32.mrf.mxu0
  %v589 = vpop.f32.mrf.mxu0
  %v590 = vadd.f32 %v129, %v589
  %v591 = vpop.f32.mrf.mxu0
  %592 = vdwg.mxu0
  %v593 = vmax.f32 %v587, 0.0
  %v594 = vmax.f32 %v590, 0.0
  %v595 = vpack.c.bf16 %v594, %v593
  %596 = vmatprep.subr.bf16.mxu0 0
  %597 = vmatpush1.bf16.msra.mxu0 %v285
  %598 = vmatprep.subr.bf16.mxu0 0
  %599 = vmatpush1.bf16.msra.mxu0 %v284
  %600 = vmatprep.subr.bf16.mxu0 0
  %601 = vmatpush1.bf16.msra.mxu0 %v283
  %602 = vmatprep.subr.bf16.mxu0 0
  %603 = vmatpush1.bf16.msra.mxu0 %v282
  %604 = vmatprep.subr.bf16.mxu0 0
  %605 = vmatpush1.bf16.msra.mxu0 %v281
  %606 = vmatprep.subr.bf16.mxu0 0
  %607 = vmatpush1.bf16.msra.mxu0 %v280
  %608 = vmatprep.subr.bf16.mxu0 0
  %609 = vmatpush1.bf16.msra.mxu0 %v279
  %610 = vmatprep.subr.bf16.mxu0 0
  %611 = vmatpush1.bf16.msra.mxu0 %v278
  %612 = vmatprep.subr.bf16.mxu0 0
  %613 = vmatpush2.bf16.msra.mxu0 0
  %614 = vmatprep.subr.bf16.mxu0 0
  %615 = vmatpush2.bf16.msra.mxu0 0
  %616 = vmatprep.subr.bf16.mxu0 0
  %617 = vmatpush2.bf16.msra.mxu0 0
  %618 = vmatprep.subr.bf16.mxu0 0
  %619 = vmatpush2.bf16.msra.mxu0 0
  %620 = vmatprep.subr.bf16.mxu0 0
  %621 = vmatpush2.bf16.msra.mxu0 0
  %622 = vmatprep.subr.bf16.mxu0 0
  %623 = vmatpush2.bf16.msra.mxu0 0
  %624 = vmatprep.subr.bf16.mxu0 0
  %625 = vmatpush2.bf16.msra.mxu0 0
  %626 = vmatprep.subr.bf16.mxu0 0
  %627 = vmatpush2.bf16.msra.mxu0 0
  %628 = vmatprep.mubr.bf16.mxu0 0
  %629 = vmatmul.mubr.bf16.gmra.mxu0 %v595
  %v630 = vpop.f32.mrf.mxu0
  %v631 = vadd.f32 %v244, %v630
  %v632 = vpop.f32.mrf.mxu0
  %v633 = vpop.f32.mrf.mxu0
  %v634 = vadd.f32 %v244, %v633
  %v635 = vpop.f32.mrf.mxu0
  %636 = vdwg.mxu0
  %637 = vset.pattern.permute.xlu0 2
  %638 = vperm.xlu0 %637, %v39
  %v639 = vpop.permute.xlu0 %638
  %641 = vset.pattern.permute.xlu0 2
  %642 = vperm.xlu0 %641, %v40
  %v643 = vpop.permute.xlu0 %642
  %v645 = vmul.f32 %v631, %v639
  %v646 = vmul.f32 %v634, %v643
  %v647 = vadd.f32 %v496, %v645
  %v648 = vadd.f32 %v497, %v646
  %v649 = vld [vmem:[%s3] sm:$0xf]
  %v650 = vld [vmem:[%s3 + $0x4] sm:$0xf]
  %v653 = vunpack.c.l.b16 %v649
  %v654 = vunpack.c.l.b16 %v650
  %v655 = vpack.c.b16 %v654, %v653
  %v657 = vsel %vm56, %v655, 0
  %659 = vmatprep.subr.bf16.mxu0 0
  %660 = vmatpush1.bf16.msra.mxu0 0
  %661 = vmatprep.subr.bf16.mxu0 0
  %662 = vmatpush1.bf16.msra.mxu0 0
  %663 = vmatprep.subr.bf16.mxu0 0
  %664 = vmatpush1.bf16.msra.mxu0 0
  %665 = vmatprep.subr.bf16.mxu0 0
  %666 = vmatpush1.bf16.msra.mxu0 0
  %667 = vmatprep.subr.bf16.mxu0 0
  %668 = vmatpush1.bf16.msra.mxu0 0
  %669 = vmatprep.subr.bf16.mxu0 0
  %670 = vmatpush1.bf16.msra.mxu0 0
  %671 = vmatprep.subr.bf16.mxu0 0
  %672 = vmatpush1.bf16.msra.mxu0 0
  %673 = vmatprep.subr.bf16.mxu0 0
  %674 = vmatpush1.bf16.msra.mxu0 %v62
  %675 = vmatprep.subr.bf16.mxu0 0
  %676 = vmatpush2.bf16.msra.mxu0 0
  %677 = vmatprep.subr.bf16.mxu0 0
  %678 = vmatpush2.bf16.msra.mxu0 0
  %679 = vmatprep.subr.bf16.mxu0 0
  %680 = vmatpush2.bf16.msra.mxu0 0
  %681 = vmatprep.subr.bf16.mxu0 0
  %682 = vmatpush2.bf16.msra.mxu0 0
  %683 = vmatprep.subr.bf16.mxu0 0
  %684 = vmatpush2.bf16.msra.mxu0 0
  %685 = vmatprep.subr.bf16.mxu0 0
  %686 = vmatpush2.bf16.msra.mxu0 0
  %687 = vmatprep.subr.bf16.mxu0 0
  %688 = vmatpush2.bf16.msra.mxu0 0
  %689 = vmatprep.subr.bf16.mxu0 0
  %690 = vmatpush2.bf16.msra.mxu0 0
  %691 = vmatprep.mubr.bf16.mxu0 0
  %692 = vmatmul.mubr.bf16.gmra.mxu0 %v657
  %v693 = vpop.f32.mrf.mxu0
  %v694 = vadd.f32 %v49, %v693
  %v695 = vpop.f32.mrf.mxu0
  %v696 = vpop.f32.mrf.mxu0
  %v697 = vadd.f32 %v49, %v696
  %v698 = vpop.f32.mrf.mxu0
  %699 = vdwg.mxu0
  %v700 = vmax.f32 %v694, 0.0
  %v701 = vmax.f32 %v697, 0.0
  %v702 = vpack.c.bf16 %v701, %v700
  %703 = vmatprep.subr.bf16.mxu0 0
  %704 = vmatpush1.bf16.msra.mxu0 %v170
  %705 = vmatprep.subr.bf16.mxu0 0
  %706 = vmatpush1.bf16.msra.mxu0 %v169
  %707 = vmatprep.subr.bf16.mxu0 0
  %708 = vmatpush1.bf16.msra.mxu0 %v168
  %709 = vmatprep.subr.bf16.mxu0 0
  %710 = vmatpush1.bf16.msra.mxu0 %v167
  %711 = vmatprep.subr.bf16.mxu0 0
  %712 = vmatpush1.bf16.msra.mxu0 %v166
  %713 = vmatprep.subr.bf16.mxu0 0
  %714 = vmatpush1.bf16.msra.mxu0 %v165
  %715 = vmatprep.subr.bf16.mxu0 0
  %716 = vmatpush1.bf16.msra.mxu0 %v164
  %717 = vmatprep.subr.bf16.mxu0 0
  %718 = vmatpush1.bf16.msra.mxu0 %v163
  %719 = vmatprep.subr.bf16.mxu0 0
  %720 = vmatpush2.bf16.msra.mxu0 0
  %721 = vmatprep.subr.bf16.mxu0 0
  %722 = vmatpush2.bf16.msra.mxu0 0
  %723 = vmatprep.subr.bf16.mxu0 0
  %724 = vmatpush2.bf16.msra.mxu0 0
  %725 = vmatprep.subr.bf16.mxu0 0
  %726 = vmatpush2.bf16.msra.mxu0 0
  %727 = vmatprep.subr.bf16.mxu0 0
  %728 = vmatpush2.bf16.msra.mxu0 0
  %729 = vmatprep.subr.bf16.mxu0 0
  %730 = vmatpush2.bf16.msra.mxu0 0
  %731 = vmatprep.subr.bf16.mxu0 0
  %732 = vmatpush2.bf16.msra.mxu0 0
  %733 = vmatprep.subr.bf16.mxu0 0
  %734 = vmatpush2.bf16.msra.mxu0 0
  %735 = vmatprep.mubr.bf16.mxu0 0
  %736 = vmatmul.mubr.bf16.gmra.mxu0 %v702
  %v737 = vpop.f32.mrf.mxu0
  %v738 = vadd.f32 %v129, %v737
  %v739 = vpop.f32.mrf.mxu0
  %v740 = vpop.f32.mrf.mxu0
  %v741 = vadd.f32 %v129, %v740
  %v742 = vpop.f32.mrf.mxu0
  %743 = vdwg.mxu0
  %v744 = vmax.f32 %v738, 0.0
  %v745 = vmax.f32 %v741, 0.0
  %v746 = vpack.c.bf16 %v745, %v744
  %747 = vmatprep.subr.bf16.mxu0 0
  %748 = vmatpush1.bf16.msra.mxu0 %v285
  %749 = vmatprep.subr.bf16.mxu0 0
  %750 = vmatpush1.bf16.msra.mxu0 %v284
  %751 = vmatprep.subr.bf16.mxu0 0
  %752 = vmatpush1.bf16.msra.mxu0 %v283
  %753 = vmatprep.subr.bf16.mxu0 0
  %754 = vmatpush1.bf16.msra.mxu0 %v282
  %755 = vmatprep.subr.bf16.mxu0 0
  %756 = vmatpush1.bf16.msra.mxu0 %v281
  %757 = vmatprep.subr.bf16.mxu0 0
  %758 = vmatpush1.bf16.msra.mxu0 %v280
  %759 = vmatprep.subr.bf16.mxu0 0
  %760 = vmatpush1.bf16.msra.mxu0 %v279
  %761 = vmatprep.subr.bf16.mxu0 0
  %762 = vmatpush1.bf16.msra.mxu0 %v278
  %763 = vmatprep.subr.bf16.mxu0 0
  %764 = vmatpush2.bf16.msra.mxu0 0
  %765 = vmatprep.subr.bf16.mxu0 0
  %766 = vmatpush2.bf16.msra.mxu0 0
  %767 = vmatprep.subr.bf16.mxu0 0
  %768 = vmatpush2.bf16.msra.mxu0 0
  %769 = vmatprep.subr.bf16.mxu0 0
  %770 = vmatpush2.bf16.msra.mxu0 0
  %771 = vmatprep.subr.bf16.mxu0 0
  %772 = vmatpush2.bf16.msra.mxu0 0
  %773 = vmatprep.subr.bf16.mxu0 0
  %774 = vmatpush2.bf16.msra.mxu0 0
  %775 = vmatprep.subr.bf16.mxu0 0
  %776 = vmatpush2.bf16.msra.mxu0 0
  %777 = vmatprep.subr.bf16.mxu0 0
  %778 = vmatpush2.bf16.msra.mxu0 0
  %779 = vmatprep.mubr.bf16.mxu0 0
  %780 = vmatmul.mubr.bf16.gmra.mxu0 %v746
  %v781 = vpop.f32.mrf.mxu0
  %v782 = vadd.f32 %v244, %v781
  %v783 = vpop.f32.mrf.mxu0
  %v784 = vpop.f32.mrf.mxu0
  %v785 = vadd.f32 %v244, %v784
  %v786 = vpop.f32.mrf.mxu0
  %787 = vdwg.mxu0
  %788 = vset.pattern.permute.xlu0 3
  %789 = vperm.xlu0 %788, %v39
  %v790 = vpop.permute.xlu0 %789
  %792 = vset.pattern.permute.xlu0 3
  %793 = vperm.xlu0 %792, %v40
  %v794 = vpop.permute.xlu0 %793
  %v796 = vmul.f32 %v782, %v790
  %v797 = vmul.f32 %v785, %v794
  %v798 = vadd.f32 %v647, %v796
  %v799 = vadd.f32 %v648, %v797
  %v800 = vpack.c.bf16 %v799, %v798
  %v802 = vunpack.c.l.b16 %v800
  %v803 = vunpack.c.h.b16 %v800
  %v804 = vpack.c.b16 %v802, %v802
  %v805 = vpack.c.b16 %v803, %v803
  %808 = vst [vmem:[%s11] sm:$0xf] %v804
  %809 = vst [vmem:[%s11 + $0x4] sm:$0xf] %v805
  // Predicated region
  $region46: #{mlp_module_forward.1} parent=0 // pred_check
    _
  $region47: #{mlp_module_forward.1} parent=0 // pred_check_branch
    %811 = sbr.rel (0) target = $region49
  $region48: #{mlp_module_forward.1} parent=0 // pred_region
    _
  $region49: #{mlp_module_forward.1} parent=0 // pred_fallthru
    _
  // Predicated region
  $region50: #{mlp_module_forward.1} parent=0 // pred_check
    _
  $region51: #{mlp_module_forward.1} parent=0 // pred_check_branch
    %813 = sbr.rel (0) target = $region53
  $region52: #{mlp_module_forward.1} parent=0 // pred_region
    _
  $region53: #{mlp_module_forward.1} parent=0 // pred_fallthru
    _

</llo_original>
